<compile_context>
chip_gen: v6e
topology: v6e:2x2x1
jax: 0.10.0
libtpu: 0.0.40
codegen_flags: <defaults>
</compile_context>

<pallas_src>
import functools

import jax
import jax.numpy as jnp
from jax import lax
from jax.experimental import pallas as pl
from jax.experimental.pallas import tpu as pltpu

EPS = 1e-5          # PyTorch LayerNorm default eps
_MAX_BLOCK_B = 4096  # batch-tile cap (rows); single grid step up to this size


def _round_up(n: int, m: int) -> int:
    return ((n + m - 1) // m) * m


def _mlp_kernel(xt_ref,
                w0t_ref, p0_ref,
                w1t_ref, p1_ref,
                w2t_ref, b2_ref,
                o_ref):
    """Fused MLP in feature-major layout: everything is (features, batch),
    i.e. features on sublanes, batch on lanes. [Linear->LN->ReLU] x2 -> Linear."""
    h = xt_ref[...].astype(jnp.float32)                       # (Cin, bb)

    def block(h, wt_ref, p_ref):
        p = p_ref[...]                                         # (H, 3): [bias|gamma|beta]
        # (H, K) @ (K, bb) -> (H, bb): MXU streams bb columns.
        h = jnp.dot(wt_ref[...], h, preferred_element_type=jnp.float32) + p[:, 0:1]
        # LayerNorm over the feature axis (axis 0), biased variance like PyTorch.
        mu = jnp.mean(h, axis=0, keepdims=True)                # (1, bb)
        ex2 = jnp.mean(h * h, axis=0, keepdims=True)           # (1, bb)
        inv = lax.rsqrt(ex2 - mu * mu + EPS)                   # (1, bb) on the EUP
        h = (h - mu) * inv * p[:, 1:2] + p[:, 2:3]             # gamma / beta: (H, 1)
        return jnp.maximum(h, 0.0)                             # ReLU

    h = block(h, w0t_ref, p0_ref)
    h = block(h, w1t_ref, p1_ref)

    # Final Linear: (Cout, H) @ (H, bb) -> (Cout, bb); lane-dense output.
    out = jnp.dot(w2t_ref[...], h, preferred_element_type=jnp.float32) + b2_ref[...]
    o_ref[...] = out.astype(o_ref.dtype)                       # Dropout(p=0.0) == identity


@functools.partial(jax.jit, static_argnames=("block_b",))
def mlp_forward(x, params, *, block_b=None):
    """x: (B, in_channels) float32 -> (B,) float32 (out_channels == 1 squeezed)."""
    (w0, b0, g0, be0, w1, b1, g1, be1, w2, b2) = params
    B, Cin = x.shape
    H = w0.shape[1]
    Cout = w2.shape[1]

    # Tile heuristic: one lane-dense tile up to the cap; only very large batches
    # produce a multi-step grid (each step still moves >= ~0.5 MB of x).
    if block_b is None:
        block_b = min(_round_up(B, 128), _MAX_BLOCK_B)
    block_b = _round_up(block_b, 128)
    B_padded = _round_up(B, block_b)
    num_blocks = B_padded // block_b

    # Feature-major inputs / params (weights stored (in,out); transpose once here,
    # trivially cheap under jit since all weights are a few KB).
    xt = jnp.pad(x, ((0, B_padded - B), (0, 0))).T             # (Cin, B_padded)
    w0t, w1t, w2t = w0.T, w1.T, w2.T                           # (H,Cin), (H,H), (Cout,H)
    p0 = jnp.stack([b0, g0, be0], axis=1)                      # (H, 3)
    p1 = jnp.stack([b1, g1, be1], axis=1)                      # (H, 3)
    b2c = b2.reshape(Cout, 1)                                  # (Cout, 1)

    full = lambda shape: pl.BlockSpec(shape, lambda i: (0, 0))

    out_t = pl.pallas_call(
        _mlp_kernel,
        out_shape=jax.ShapeDtypeStruct((Cout, B_padded), x.dtype),
        grid_spec=pltpu.PrefetchScalarGridSpec(
            num_scalar_prefetch=0,
            grid=(num_blocks,),
            in_specs=[
                pl.BlockSpec((Cin, block_b), lambda i: (0, i)),  # x^T tile
                full((H, Cin)), full((H, 3)),                    # layer 0 (VMEM-resident)
                full((H, H)),   full((H, 3)),                    # layer 1
                full((Cout, H)), full((Cout, 1)),                # layer 2
            ],
            out_specs=pl.BlockSpec((Cout, block_b), lambda i: (0, i)),
        ),
        compiler_params=pltpu.CompilerParams(
            dimension_semantics=("parallel",)),
    )(xt, w0t, p0, w1t, p1, w2t, b2c)

    out = out_t[:, :B]                                          # drop padded columns
    # .squeeze(-1) of the PyTorch forward (out_channels == 1)
    return out.reshape(B) if Cout == 1 else out.T


def init_params(key, in_channels, hidden_channels, out_channels):
    """Deterministic init; Linear weights stored as (in, out)."""
    ks = jax.random.split(key, 3)

    def lin(k, fan_in, fan_out):
        bound = 1.0 / jnp.sqrt(fan_in)
        kw, kb = jax.random.split(k)
        w = jax.random.uniform(kw, (fan_in, fan_out), jnp.float32, -bound, bound)
        b = jax.random.uniform(kb, (fan_out,), jnp.float32, -bound, bound)
        return w, b

    w0, b0 = lin(ks[0], in_channels, hidden_channels)
    g0, be0 = jnp.ones((hidden_channels,), jnp.float32), jnp.zeros((hidden_channels,), jnp.float32)
    w1, b1 = lin(ks[1], hidden_channels, hidden_channels)
    g1, be1 = jnp.ones((hidden_channels,), jnp.float32), jnp.zeros((hidden_channels,), jnp.float32)
    w2, b2 = lin(ks[2], hidden_channels, out_channels)
    return (w0, b0, g0, be0, w1, b1, g1, be1, w2, b2)


def mlp_reference(x, params):
    """Plain-JAX reference mirroring the PyTorch forward."""
    (w0, b0, g0, be0, w1, b1, g1, be1, w2, b2) = params

    def ln(h, g, be):
        mu = jnp.mean(h, axis=-1, keepdims=True)
        var = jnp.mean((h - mu) ** 2, axis=-1, keepdims=True)
        return (h - mu) / jnp.sqrt(var + EPS) * g + be

    h = jnp.maximum(ln(x @ w0 + b0, g0, be0), 0.0)
    h = jnp.maximum(ln(h @ w1 + b1, g1, be1), 0.0)
    out = h @ w2 + b2
    return jnp.squeeze(out, -1)


if __name__ == "__main__":
    in_channels, hidden_channels, out_channels = 32, 64, 1

    key = jax.random.PRNGKey(0)
    kx, kx2, kp = jax.random.split(key, 3)
    params = init_params(kp, in_channels, hidden_channels, out_channels)

    # Small batch: single-tile path (padded to one lane-dense 128-row tile).
    batch = 16
    x = jax.random.normal(kx, (batch, in_channels), jnp.float32)
    y = jax.block_until_ready(mlp_forward(x, params))
    y_ref = mlp_reference(x, params)
    assert y.shape == (batch,)
    assert jnp.allclose(y, y_ref, atol=1e-4, rtol=1e-4), "mismatch vs reference (small batch)"

    # Non-divisible batch with a forced small tile: exercises the multi-step
    # grid + padded-tail path that large batches (B > 4096) would take.
    batch2 = 300
    x2 = jax.random.normal(kx2, (batch2, in_channels), jnp.float32)
    y2 = jax.block_until_ready(mlp_forward(x2, params, block_b=128))
    y2_ref = mlp_reference(x2, params)
    assert y2.shape == (batch2,)
    assert jnp.allclose(y2, y2_ref, atol=1e-4, rtol=1e-4), "mismatch vs reference (padded batch)"

    print("KERNEL_OK")
</pallas_src>

<mosaic_0001>
module attributes {stable_mosaic.version = 11 : i64} {
  func.func @_mlp_kernel(%arg0: i32, %arg1: memref<32x128xf32, #tpu.memory_space<vmem>>, %arg2: memref<64x32xf32, #tpu.memory_space<vmem>>, %arg3: memref<64x3xf32, #tpu.memory_space<vmem>>, %arg4: memref<64x64xf32, #tpu.memory_space<vmem>>, %arg5: memref<64x3xf32, #tpu.memory_space<vmem>>, %arg6: memref<1x64xf32, #tpu.memory_space<vmem>>, %arg7: memref<1x1xf32, #tpu.memory_space<vmem>>, %arg8: memref<1x128xf32, #tpu.memory_space<vmem>>) attributes {dimension_semantics = [#tpu.dimension_semantics<parallel>], iteration_bounds = array<i64: 1>, scalar_prefetch = 0 : i64, scratch_operands = 0 : i64, tpu.core_type = #tpu.core_type<tc>, window_params = [{transform_indices = @transform_0, window_bounds = array<i64: 32, 128>}, {pipeline_mode = #tpu.pipeline_mode<synchronous>, transform_indices = @transform_1, window_bounds = array<i64: 64, 32>}, {pipeline_mode = #tpu.pipeline_mode<synchronous>, transform_indices = @transform_2, window_bounds = array<i64: 64, 3>}, {pipeline_mode = #tpu.pipeline_mode<synchronous>, transform_indices = @transform_3, window_bounds = array<i64: 64, 64>}, {pipeline_mode = #tpu.pipeline_mode<synchronous>, transform_indices = @transform_4, window_bounds = array<i64: 64, 3>}, {pipeline_mode = #tpu.pipeline_mode<synchronous>, transform_indices = @transform_5, window_bounds = array<i64: 1, 64>}, {pipeline_mode = #tpu.pipeline_mode<synchronous>, transform_indices = @transform_6, window_bounds = array<i64: 1, 1>}, {transform_indices = @transform_7, window_bounds = array<i64: 1, 128>}]} {
    %c0 = arith.constant 0 : index
    %c0_0 = arith.constant 0 : index
    %0 = vector.load %arg1[%c0, %c0_0] : memref<32x128xf32, #tpu.memory_space<vmem>>, vector<32x128xf32>
    %c0_1 = arith.constant 0 : index
    %c0_2 = arith.constant 0 : index
    %1 = vector.load %arg3[%c0_1, %c0_2] : memref<64x3xf32, #tpu.memory_space<vmem>>, vector<64x3xf32>
    %c0_3 = arith.constant 0 : index
    %c0_4 = arith.constant 0 : index
    %2 = vector.load %arg2[%c0_3, %c0_4] : memref<64x32xf32, #tpu.memory_space<vmem>>, vector<64x32xf32>
    %cst = arith.constant dense<0.000000e+00> : vector<64x128xf32>
    %3 = tpu.matmul %2, %0, %cst {dimension_numbers = #tpu.dot_dimension_numbers<[1], [0], [0], [1], [0, 0, 1, 1], [], []>} : vector<64x32xf32>, vector<32x128xf32>, vector<64x128xf32> -> vector<64x128xf32>
    %4 = vector.extract_strided_slice %1 {offsets = [0, 0], sizes = [64, 1], strides = [1, 1]} : vector<64x3xf32> to vector<64x1xf32>
    %5 = vector.broadcast %4 : vector<64x1xf32> to vector<64x128xf32>
    %6 = arith.addf %3, %5 : vector<64x128xf32>
    %cst_5 = arith.constant dense<0.000000e+00> : vector<128xf32>
    %7 = vector.multi_reduction <add>, %6, %cst_5 [0] : vector<64x128xf32> to vector<128xf32>
    %8 = vector.shape_cast %7 : vector<128xf32> to vector<1x128xf32>
    %cst_6 = arith.constant 6.400000e+01 : f32
    %9 = vector.broadcast %cst_6 : f32 to vector<1x128xf32>
    %10 = arith.divf %8, %9 : vector<1x128xf32>
    %11 = arith.mulf %6, %6 : vector<64x128xf32>
    %cst_7 = arith.constant dense<0.000000e+00> : vector<128xf32>
    %12 = vector.multi_reduction <add>, %11, %cst_7 [0] : vector<64x128xf32> to vector<128xf32>
    %13 = vector.shape_cast %12 : vector<128xf32> to vector<1x128xf32>
    %cst_8 = arith.constant 6.400000e+01 : f32
    %14 = vector.broadcast %cst_8 : f32 to vector<1x128xf32>
    %15 = arith.divf %13, %14 : vector<1x128xf32>
    %16 = arith.mulf %10, %10 : vector<1x128xf32>
    %17 = arith.subf %15, %16 : vector<1x128xf32>
    %cst_9 = arith.constant 9.99999974E-6 : f32
    %18 = vector.broadcast %cst_9 : f32 to vector<1x128xf32>
    %19 = arith.addf %17, %18 : vector<1x128xf32>
    %20 = math.rsqrt %19 : vector<1x128xf32>
    %21 = vector.broadcast %10 : vector<1x128xf32> to vector<64x128xf32>
    %22 = arith.subf %6, %21 : vector<64x128xf32>
    %23 = vector.broadcast %20 : vector<1x128xf32> to vector<64x128xf32>
    %24 = arith.mulf %22, %23 : vector<64x128xf32>
    %25 = vector.extract_strided_slice %1 {offsets = [0, 1], sizes = [64, 1], strides = [1, 1]} : vector<64x3xf32> to vector<64x1xf32>
    %26 = vector.broadcast %25 : vector<64x1xf32> to vector<64x128xf32>
    %27 = arith.mulf %24, %26 : vector<64x128xf32>
    %28 = vector.extract_strided_slice %1 {offsets = [0, 2], sizes = [64, 1], strides = [1, 1]} : vector<64x3xf32> to vector<64x1xf32>
    %29 = vector.broadcast %28 : vector<64x1xf32> to vector<64x128xf32>
    %30 = arith.addf %27, %29 : vector<64x128xf32>
    %cst_10 = arith.constant 0.000000e+00 : f32
    %31 = vector.broadcast %cst_10 : f32 to vector<64x128xf32>
    %32 = arith.maximumf %30, %31 : vector<64x128xf32>
    %c0_11 = arith.constant 0 : index
    %c0_12 = arith.constant 0 : index
    %33 = vector.load %arg5[%c0_11, %c0_12] : memref<64x3xf32, #tpu.memory_space<vmem>>, vector<64x3xf32>
    %c0_13 = arith.constant 0 : index
    %c0_14 = arith.constant 0 : index
    %34 = vector.load %arg4[%c0_13, %c0_14] : memref<64x64xf32, #tpu.memory_space<vmem>>, vector<64x64xf32>
    %cst_15 = arith.constant dense<0.000000e+00> : vector<64x128xf32>
    %35 = tpu.matmul %34, %32, %cst_15 {dimension_numbers = #tpu.dot_dimension_numbers<[1], [0], [0], [1], [0, 0, 1, 1], [], []>} : vector<64x64xf32>, vector<64x128xf32>, vector<64x128xf32> -> vector<64x128xf32>
    %36 = vector.extract_strided_slice %33 {offsets = [0, 0], sizes = [64, 1], strides = [1, 1]} : vector<64x3xf32> to vector<64x1xf32>
    %37 = vector.broadcast %36 : vector<64x1xf32> to vector<64x128xf32>
    %38 = arith.addf %35, %37 : vector<64x128xf32>
    %cst_16 = arith.constant dense<0.000000e+00> : vector<128xf32>
    %39 = vector.multi_reduction <add>, %38, %cst_16 [0] : vector<64x128xf32> to vector<128xf32>
    %40 = vector.shape_cast %39 : vector<128xf32> to vector<1x128xf32>
    %cst_17 = arith.constant 6.400000e+01 : f32
    %41 = vector.broadcast %cst_17 : f32 to vector<1x128xf32>
    %42 = arith.divf %40, %41 : vector<1x128xf32>
    %43 = arith.mulf %38, %38 : vector<64x128xf32>
    %cst_18 = arith.constant dense<0.000000e+00> : vector<128xf32>
    %44 = vector.multi_reduction <add>, %43, %cst_18 [0] : vector<64x128xf32> to vector<128xf32>
    %45 = vector.shape_cast %44 : vector<128xf32> to vector<1x128xf32>
    %cst_19 = arith.constant 6.400000e+01 : f32
    %46 = vector.broadcast %cst_19 : f32 to vector<1x128xf32>
    %47 = arith.divf %45, %46 : vector<1x128xf32>
    %48 = arith.mulf %42, %42 : vector<1x128xf32>
    %49 = arith.subf %47, %48 : vector<1x128xf32>
    %cst_20 = arith.constant 9.99999974E-6 : f32
    %50 = vector.broadcast %cst_20 : f32 to vector<1x128xf32>
    %51 = arith.addf %49, %50 : vector<1x128xf32>
    %52 = math.rsqrt %51 : vector<1x128xf32>
    %53 = vector.broadcast %42 : vector<1x128xf32> to vector<64x128xf32>
    %54 = arith.subf %38, %53 : vector<64x128xf32>
    %55 = vector.broadcast %52 : vector<1x128xf32> to vector<64x128xf32>
    %56 = arith.mulf %54, %55 : vector<64x128xf32>
    %57 = vector.extract_strided_slice %33 {offsets = [0, 1], sizes = [64, 1], strides = [1, 1]} : vector<64x3xf32> to vector<64x1xf32>
    %58 = vector.broadcast %57 : vector<64x1xf32> to vector<64x128xf32>
    %59 = arith.mulf %56, %58 : vector<64x128xf32>
    %60 = vector.extract_strided_slice %33 {offsets = [0, 2], sizes = [64, 1], strides = [1, 1]} : vector<64x3xf32> to vector<64x1xf32>
    %61 = vector.broadcast %60 : vector<64x1xf32> to vector<64x128xf32>
    %62 = arith.addf %59, %61 : vector<64x128xf32>
    %cst_21 = arith.constant 0.000000e+00 : f32
    %63 = vector.broadcast %cst_21 : f32 to vector<64x128xf32>
    %64 = arith.maximumf %62, %63 : vector<64x128xf32>
    %c0_22 = arith.constant 0 : index
    %c0_23 = arith.constant 0 : index
    %65 = vector.load %arg6[%c0_22, %c0_23] : memref<1x64xf32, #tpu.memory_space<vmem>>, vector<1x64xf32>
    %cst_24 = arith.constant dense<0.000000e+00> : vector<1x128xf32>
    %66 = tpu.matmul %65, %64, %cst_24 {dimension_numbers = #tpu.dot_dimension_numbers<[1], [0], [0], [1], [0, 0, 1, 1], [], []>} : vector<1x64xf32>, vector<64x128xf32>, vector<1x128xf32> -> vector<1x128xf32>
    %c0_25 = arith.constant 0 : index
    %c0_26 = arith.constant 0 : index
    %67 = vector.load %arg7[%c0_25, %c0_26] : memref<1x1xf32, #tpu.memory_space<vmem>>, vector<1x1xf32>
    %68 = vector.broadcast %67 : vector<1x1xf32> to vector<1x128xf32>
    %69 = arith.addf %66, %68 : vector<1x128xf32>
    %c0_27 = arith.constant 0 : index
    %c0_28 = arith.constant 0 : index
    %70 = vector.load %arg8[%c0_27, %c0_28] : memref<1x128xf32, #tpu.memory_space<vmem>>, vector<1x128xf32>
    tpu.vector_store %arg8[%c0_27, %c0_28], %69 {strides = array<i32>} : memref<1x128xf32, #tpu.memory_space<vmem>>, vector<1x128xf32>,
    return
  }
  func.func @transform_0(%arg0: i32) -> (i32, i32) {
    %c0_i32 = arith.constant 0 : i32
    %c0_i32_0 = arith.constant 0 : i32
    return %c0_i32, %arg0 : i32, i32
  }
  func.func @transform_1(%arg0: i32) -> (i32, i32) {
    %c0_i32 = arith.constant 0 : i32
    %c0_i32_0 = arith.constant 0 : i32
    %c0_i32_1 = arith.constant 0 : i32
    return %c0_i32, %c0_i32_0 : i32, i32
  }
  func.func @transform_2(%arg0: i32) -> (i32, i32) {
    %c0_i32 = arith.constant 0 : i32
    %c0_i32_0 = arith.constant 0 : i32
    %c0_i32_1 = arith.constant 0 : i32
    return %c0_i32, %c0_i32_0 : i32, i32
  }
  func.func @transform_3(%arg0: i32) -> (i32, i32) {
    %c0_i32 = arith.constant 0 : i32
    %c0_i32_0 = arith.constant 0 : i32
    %c0_i32_1 = arith.constant 0 : i32
    return %c0_i32, %c0_i32_0 : i32, i32
  }
  func.func @transform_4(%arg0: i32) -> (i32, i32) {
    %c0_i32 = arith.constant 0 : i32
    %c0_i32_0 = arith.constant 0 : i32
    %c0_i32_1 = arith.constant 0 : i32
    return %c0_i32, %c0_i32_0 : i32, i32
  }
  func.func @transform_5(%arg0: i32) -> (i32, i32) {
    %c0_i32 = arith.constant 0 : i32
    %c0_i32_0 = arith.constant 0 : i32
    %c0_i32_1 = arith.constant 0 : i32
    return %c0_i32, %c0_i32_0 : i32, i32
  }
  func.func @transform_6(%arg0: i32) -> (i32, i32) {
    %c0_i32 = arith.constant 0 : i32
    %c0_i32_0 = arith.constant 0 : i32
    %c0_i32_1 = arith.constant 0 : i32
    return %c0_i32, %c0_i32_0 : i32, i32
  }
  func.func @transform_7(%arg0: i32) -> (i32, i32) {
    %c0_i32 = arith.constant 0 : i32
    %c0_i32_0 = arith.constant 0 : i32
    return %c0_i32, %arg0 : i32, i32
  }
}

</mosaic_0001>

<llo_original>
// kernel: mlp_forward.1
$region0: #{mlp_forward.1}
  #allocation0 [shape = 'u32[]', space=smem, size = 0x4, offset = 0x4, fixed_abs, tag = 'smem constant byte address 0x4 - core index']
  #allocation1 [shape = 'u32[144,128]{1,0:T(1,128)}', space=vmem, size = 0x12000, scoped, tag = 'internal scratch']
  #allocation2 [shape = 'f32[1,1]{1,0:T(1,128)S(1)}', space=vmem, size = 0x200, scoped, tag = 'scoped memory for mlp_forward.1']
  %s0 = inlined_call_operand.vmem [shape: f32[32,128], index: 0, kind: input, shape index: {}]
  %s1 = inlined_call_operand.vmem [shape: f32[64,32], index: 1, kind: input, shape index: {}]
  %s2 = inlined_call_operand.vmem [shape: f32[64,3], index: 2, kind: input, shape index: {}]
  %s3 = inlined_call_operand.vmem [shape: f32[64,64], index: 3, kind: input, shape index: {}]
  %s4 = inlined_call_operand.vmem [shape: f32[64,3], index: 4, kind: input, shape index: {}]
  %s5 = inlined_call_operand.vmem [shape: f32[1,64], index: 5, kind: input, shape index: {}]
  %s6 = inlined_call_operand.<no memory space> [shape: f32[1,1], index: 6, kind: input, shape index: {}]
  %s7 = inlined_call_operand.vmem [shape: f32[1,128], index: 7, kind: output, shape index: {}]
  %s8 = sld [smem:[#allocation0]]
  $region38: #{mlp_forward.1} parent=0
    _
  %s10 = ssub.s32 1, %s8
  %s11 = scalar_select 0, %s10, %s8
  %v12 = vstv %s6
  %13 = vst [vmem:[#allocation2] sm:$0x1] %v12
  // Predicated region
  $region2: #{mlp_forward.1} parent=0 // pred_check
    _
  $region3: #{mlp_forward.1} parent=0 // pred_check_branch
    %15 = sbr.rel (0) target = $region5
  $region4: #{mlp_forward.1} parent=0 // pred_region
    _
  $region5: #{mlp_forward.1} parent=0 // pred_fallthru
    _
  // Predicated region
  $region6: #{mlp_forward.1} parent=0 // pred_check
    _
  $region7: #{mlp_forward.1} parent=0 // pred_check_branch
    %17 = sbr.rel (0) target = $region9
  $region8: #{mlp_forward.1} parent=0 // pred_region
    _
  $region9: #{mlp_forward.1} parent=0 // pred_fallthru
    _
  // Predicated region
  $region10: #{mlp_forward.1} parent=0 // pred_check
    _
  $region11: #{mlp_forward.1} parent=0 // pred_check_branch
    %19 = sbr.rel (0) target = $region13
  $region12: #{mlp_forward.1} parent=0 // pred_region
    _
  $region13: #{mlp_forward.1} parent=0 // pred_fallthru
    _
  // Predicated region
  $region14: #{mlp_forward.1} parent=0 // pred_check
    _
  $region15: #{mlp_forward.1} parent=0 // pred_check_branch
    %21 = sbr.rel (0) target = $region17
  $region16: #{mlp_forward.1} parent=0 // pred_region
    _
  $region17: #{mlp_forward.1} parent=0 // pred_fallthru
    _
  // Predicated region
  $region18: #{mlp_forward.1} parent=0 // pred_check
    _
  $region19: #{mlp_forward.1} parent=0 // pred_check_branch
    %23 = sbr.rel (0) target = $region21
  $region20: #{mlp_forward.1} parent=0 // pred_region
    _
  $region21: #{mlp_forward.1} parent=0 // pred_fallthru
    _
  // Predicated region
  $region22: #{mlp_forward.1} parent=0 // pred_check
    _
  $region23: #{mlp_forward.1} parent=0 // pred_check_branch
    %25 = sbr.rel (0) target = $region25
  $region24: #{mlp_forward.1} parent=0 // pred_region
    _
  $region25: #{mlp_forward.1} parent=0 // pred_fallthru
    _
  // Predicated region
  $region26: #{mlp_forward.1} parent=0 // pred_check
    _
  $region27: #{mlp_forward.1} parent=0 // pred_check_branch
    %27 = sbr.rel (0) target = $region29
  $region28: #{mlp_forward.1} parent=0 // pred_region
    _
  $region29: #{mlp_forward.1} parent=0 // pred_fallthru
    _
  %v28 = vld [vmem:[%s0] sm:$0xff]
  %v29 = vld [vmem:[%s0 + $0x8] sm:$0xff]
  %v30 = vld [vmem:[%s0 + $0x10] sm:$0xff]
  %v31 = vld [vmem:[%s0 + $0x18] sm:$0xff]
  %v32 = vld [vmem:[%s2] sm:$0xff]
  %v33 = vld [vmem:[%s2 + $0x8] sm:$0xff]
  %v34 = vld [vmem:[%s2 + $0x10] sm:$0xff]
  %v35 = vld [vmem:[%s2 + $0x18] sm:$0xff]
  %v36 = vld [vmem:[%s2 + $0x20] sm:$0xff]
  %v37 = vld [vmem:[%s2 + $0x28] sm:$0xff]
  %v38 = vld [vmem:[%s2 + $0x30] sm:$0xff]
  %v39 = vld [vmem:[%s2 + $0x38] sm:$0xff]
  %v40 = vld [vmem:[%s1] sm:$0xff]
  %v41 = vld [vmem:[%s1 + $0x8] sm:$0xff]
  %v42 = vld [vmem:[%s1 + $0x10] sm:$0xff]
  %v43 = vld [vmem:[%s1 + $0x18] sm:$0xff]
  %v44 = vld [vmem:[%s1 + $0x20] sm:$0xff]
  %v45 = vld [vmem:[%s1 + $0x28] sm:$0xff]
  %v46 = vld [vmem:[%s1 + $0x30] sm:$0xff]
  %v47 = vld [vmem:[%s1 + $0x38] sm:$0xff]
  %49 = vset.pattern.permute.xlu0 0
  %50 = vperm.xlu0 %49, %v32
  %v51 = vpop.permute.xlu0 %50
  %54 = vset.pattern.permute.xlu0 0
  %55 = vperm.xlu0 %54, %v33
  %v56 = vpop.permute.xlu0 %55
  %59 = vset.pattern.permute.xlu0 0
  %60 = vperm.xlu0 %59, %v34
  %v61 = vpop.permute.xlu0 %60
  %64 = vset.pattern.permute.xlu0 0
  %65 = vperm.xlu0 %64, %v35
  %v66 = vpop.permute.xlu0 %65
  %69 = vset.pattern.permute.xlu0 0
  %70 = vperm.xlu0 %69, %v36
  %v71 = vpop.permute.xlu0 %70
  %74 = vset.pattern.permute.xlu0 0
  %75 = vperm.xlu0 %74, %v37
  %v76 = vpop.permute.xlu0 %75
  %79 = vset.pattern.permute.xlu0 0
  %80 = vperm.xlu0 %79, %v38
  %v81 = vpop.permute.xlu0 %80
  %84 = vset.pattern.permute.xlu0 0
  %85 = vperm.xlu0 %84, %v39
  %v86 = vpop.permute.xlu0 %85
  %vm88 = vcmask 261120
  %v90 = vsel %vm88, %v40, 0
  %v93 = vsel %vm88, %v41, 0
  %v96 = vsel %vm88, %v42, 0
  %v99 = vsel %vm88, %v43, 0
  %v102 = vsel %vm88, %v44, 0
  %v105 = vsel %vm88, %v45, 0
  %v108 = vsel %vm88, %v46, 0
  %v111 = vsel %vm88, %v47, 0
  %113 = vmatprep.subr.mxu0 0.0
  %114 = vmatpush1.msra.mxu0 0.0
  %115 = vmatprep.subr.mxu0 0.0
  %116 = vmatpush1.msra.mxu0 0.0
  %117 = vmatprep.subr.mxu0 0.0
  %118 = vmatpush1.msra.mxu0 0.0
  %119 = vmatprep.subr.mxu0 0.0
  %120 = vmatpush1.msra.mxu0 0.0
  %121 = vmatprep.subr.mxu0 0.0
  %122 = vmatpush1.msra.mxu0 0.0
  %123 = vmatprep.subr.mxu0 0.0
  %124 = vmatpush1.msra.mxu0 0.0
  %125 = vmatprep.subr.mxu0 0.0
  %126 = vmatpush1.msra.mxu0 0.0
  %127 = vmatprep.subr.mxu0 0.0
  %128 = vmatpush1.msra.mxu0 0.0
  %129 = vmatprep.subr.mxu0 0.0
  %130 = vmatpush1.msra.mxu0 0.0
  %131 = vmatprep.subr.mxu0 0.0
  %132 = vmatpush1.msra.mxu0 0.0
  %133 = vmatprep.subr.mxu0 0.0
  %134 = vmatpush1.msra.mxu0 0.0
  %135 = vmatprep.subr.mxu0 0.0
  %136 = vmatpush1.msra.mxu0 0.0
  %137 = vmatprep.subr.mxu0 0.0
  %138 = vmatpush1.msra.mxu0 %v31
  %139 = vmatprep.subr.mxu0 0.0
  %140 = vmatpush1.msra.mxu0 %v30
  %141 = vmatprep.subr.mxu0 0.0
  %142 = vmatpush1.msra.mxu0 %v29
  %143 = vmatprep.subr.mxu0 0.0
  %144 = vmatpush1.msra.mxu0 %v28
  %145 = vmatprep.subr.mxu0 0.0
  %146 = vmatpush2.msra.mxu0 0.0
  %147 = vmatprep.subr.mxu0 0.0
  %148 = vmatpush2.msra.mxu0 0.0
  %149 = vmatprep.subr.mxu0 0.0
  %150 = vmatpush2.msra.mxu0 0.0
  %151 = vmatprep.subr.mxu0 0.0
  %152 = vmatpush2.msra.mxu0 0.0
  %153 = vmatprep.subr.mxu0 0.0
  %154 = vmatpush2.msra.mxu0 0.0
  %155 = vmatprep.subr.mxu0 0.0
  %156 = vmatpush2.msra.mxu0 0.0
  %157 = vmatprep.subr.mxu0 0.0
  %158 = vmatpush2.msra.mxu0 0.0
  %159 = vmatprep.subr.mxu0 0.0
  %160 = vmatpush2.msra.mxu0 0.0
  %161 = vmatprep.subr.mxu0 0.0
  %162 = vmatpush2.msra.mxu0 0.0
  %163 = vmatprep.subr.mxu0 0.0
  %164 = vmatpush2.msra.mxu0 0.0
  %165 = vmatprep.subr.mxu0 0.0
  %166 = vmatpush2.msra.mxu0 0.0
  %167 = vmatprep.subr.mxu0 0.0
  %168 = vmatpush2.msra.mxu0 0.0
  %169 = vmatprep.subr.mxu0 0.0
  %170 = vmatpush2.msra.mxu0 0.0
  %171 = vmatprep.subr.mxu0 0.0
  %172 = vmatpush2.msra.mxu0 0.0
  %173 = vmatprep.subr.mxu0 0.0
  %174 = vmatpush2.msra.mxu0 0.0
  %175 = vmatprep.subr.mxu0 0.0
  %176 = vmatpush2.msra.mxu0 0.0
  %177 = vmatprep.mubr.f32.mxu0 0.0
  %178 = vmatmul.mubr.f32.gmra.mxu0 %v90
  %v179 = vpop.f32.mrf.mxu0
  %v180 = vadd.f32 %v51, %v179
  %v181 = vpop.f32.mrf.mxu0
  %182 = vmatprep.mubr.f32.mxu0 0.0
  %183 = vmatmul.mubr.f32.gmra.mxu0 %v93
  %v184 = vpop.f32.mrf.mxu0
  %v185 = vadd.f32 %v56, %v184
  %v186 = vpop.f32.mrf.mxu0
  %187 = vmatprep.mubr.f32.mxu0 0.0
  %188 = vmatmul.mubr.f32.gmra.mxu0 %v96
  %v189 = vpop.f32.mrf.mxu0
  %v190 = vadd.f32 %v61, %v189
  %v191 = vpop.f32.mrf.mxu0
  %192 = vmatprep.mubr.f32.mxu0 0.0
  %193 = vmatmul.mubr.f32.gmra.mxu0 %v99
  %v194 = vpop.f32.mrf.mxu0
  %v195 = vadd.f32 %v66, %v194
  %v196 = vpop.f32.mrf.mxu0
  %197 = vmatprep.mubr.f32.mxu0 0.0
  %198 = vmatmul.mubr.f32.gmra.mxu0 %v102
  %v199 = vpop.f32.mrf.mxu0
  %v200 = vadd.f32 %v71, %v199
  %v201 = vpop.f32.mrf.mxu0
  %202 = vmatprep.mubr.f32.mxu0 0.0
  %203 = vmatmul.mubr.f32.gmra.mxu0 %v105
  %v204 = vpop.f32.mrf.mxu0
  %v205 = vadd.f32 %v76, %v204
  %v206 = vpop.f32.mrf.mxu0
  %207 = vmatprep.mubr.f32.mxu0 0.0
  %208 = vmatmul.mubr.f32.gmra.mxu0 %v108
  %v209 = vpop.f32.mrf.mxu0
  %v210 = vadd.f32 %v81, %v209
  %v211 = vpop.f32.mrf.mxu0
  %212 = vmatprep.mubr.f32.mxu0 0.0
  %213 = vmatmul.mubr.f32.gmra.mxu0 %v111
  %v214 = vpop.f32.mrf.mxu0
  %v215 = vadd.f32 %v86, %v214
  %v216 = vpop.f32.mrf.mxu0
  %217 = vdwg.mxu0
  %v218 = vadd.f32 %v180, %v185
  %v219 = vadd.f32 %v218, %v190
  %v220 = vadd.f32 %v219, %v195
  %v221 = vadd.f32 %v220, %v200
  %v222 = vadd.f32 %v221, %v205
  %v223 = vadd.f32 %v222, %v210
  %v224 = vadd.f32 %v223, %v215
  %v225 = vrot.slane %v224, 4
  %v226 = vadd.f32 %v224, %v225
  %v227 = vrot.slane %v226, 2
  %v228 = vadd.f32 %v226, %v227
  %v229 = vrot.slane %v228, 1
  %v230 = vadd.f32 %v228, %v229
  %v231 = vrcp.pop 64.0
  %v232 = vmul.f32 %v230, %v231
  %v233 = vmul.f32 %v180, %v180
  %v234 = vmul.f32 %v185, %v185
  %v235 = vmul.f32 %v190, %v190
  %v236 = vmul.f32 %v195, %v195
  %v237 = vmul.f32 %v200, %v200
  %v238 = vmul.f32 %v205, %v205
  %v239 = vmul.f32 %v210, %v210
  %v240 = vmul.f32 %v215, %v215
  %v241 = vadd.f32 %v233, %v234
  %v242 = vadd.f32 %v241, %v235
  %v243 = vadd.f32 %v242, %v236
  %v244 = vadd.f32 %v243, %v237
  %v245 = vadd.f32 %v244, %v238
  %v246 = vadd.f32 %v245, %v239
  %v247 = vadd.f32 %v246, %v240
  %v248 = vrot.slane %v247, 4
  %v249 = vadd.f32 %v247, %v248
  %v250 = vrot.slane %v249, 2
  %v251 = vadd.f32 %v249, %v250
  %v252 = vrot.slane %v251, 1
  %v253 = vadd.f32 %v251, %v252
  %v254 = vmul.f32 %v253, %v231
  %v255 = vmul.f32 %v232, %v232
  %v256 = vsub.f32 %v254, %v255
  %v257 = vadd.f32 %v256, 1e-05
  %v258 = vrsqrt.pop %v257
  %v259 = vsub.f32 %v180, %v232
  %v260 = vsub.f32 %v185, %v232
  %v261 = vsub.f32 %v190, %v232
  %v262 = vsub.f32 %v195, %v232
  %v263 = vsub.f32 %v200, %v232
  %v264 = vsub.f32 %v205, %v232
  %v265 = vsub.f32 %v210, %v232
  %v266 = vsub.f32 %v215, %v232
  %v267 = vmul.f32 %v259, %v258
  %v268 = vmul.f32 %v260, %v258
  %v269 = vmul.f32 %v261, %v258
  %v270 = vmul.f32 %v262, %v258
  %v271 = vmul.f32 %v263, %v258
  %v272 = vmul.f32 %v264, %v258
  %v273 = vmul.f32 %v265, %v258
  %v274 = vmul.f32 %v266, %v258
  %275 = vset.pattern.permute.xlu0 1
  %276 = vperm.xlu0 %275, %v32
  %v277 = vpop.permute.xlu0 %276
  %279 = vset.pattern.permute.xlu0 1
  %280 = vperm.xlu0 %279, %v33
  %v281 = vpop.permute.xlu0 %280
  %283 = vset.pattern.permute.xlu0 1
  %284 = vperm.xlu0 %283, %v34
  %v285 = vpop.permute.xlu0 %284
  %287 = vset.pattern.permute.xlu0 1
  %288 = vperm.xlu0 %287, %v35
  %v289 = vpop.permute.xlu0 %288
  %291 = vset.pattern.permute.xlu0 1
  %292 = vperm.xlu0 %291, %v36
  %v293 = vpop.permute.xlu0 %292
  %295 = vset.pattern.permute.xlu0 1
  %296 = vperm.xlu0 %295, %v37
  %v297 = vpop.permute.xlu0 %296
  %299 = vset.pattern.permute.xlu0 1
  %300 = vperm.xlu0 %299, %v38
  %v301 = vpop.permute.xlu0 %300
  %303 = vset.pattern.permute.xlu0 1
  %304 = vperm.xlu0 %303, %v39
  %v305 = vpop.permute.xlu0 %304
  %v307 = vmul.f32 %v267, %v277
  %v308 = vmul.f32 %v268, %v281
  %v309 = vmul.f32 %v269, %v285
  %v310 = vmul.f32 %v270, %v289
  %v311 = vmul.f32 %v271, %v293
  %v312 = vmul.f32 %v272, %v297
  %v313 = vmul.f32 %v273, %v301
  %v314 = vmul.f32 %v274, %v305
  %315 = vset.pattern.permute.xlu0 2
  %316 = vperm.xlu0 %315, %v32
  %v317 = vpop.permute.xlu0 %316
  %319 = vset.pattern.permute.xlu0 2
  %320 = vperm.xlu0 %319, %v33
  %v321 = vpop.permute.xlu0 %320
  %323 = vset.pattern.permute.xlu0 2
  %324 = vperm.xlu0 %323, %v34
  %v325 = vpop.permute.xlu0 %324
  %327 = vset.pattern.permute.xlu0 2
  %328 = vperm.xlu0 %327, %v35
  %v329 = vpop.permute.xlu0 %328
  %331 = vset.pattern.permute.xlu0 2
  %332 = vperm.xlu0 %331, %v36
  %v333 = vpop.permute.xlu0 %332
  %335 = vset.pattern.permute.xlu0 2
  %336 = vperm.xlu0 %335, %v37
  %v337 = vpop.permute.xlu0 %336
  %339 = vset.pattern.permute.xlu0 2
  %340 = vperm.xlu0 %339, %v38
  %v341 = vpop.permute.xlu0 %340
  %343 = vset.pattern.permute.xlu0 2
  %344 = vperm.xlu0 %343, %v39
  %v345 = vpop.permute.xlu0 %344
  %v347 = vadd.f32 %v307, %v317
  %v348 = vadd.f32 %v308, %v321
  %v349 = vadd.f32 %v309, %v325
  %v350 = vadd.f32 %v310, %v329
  %v351 = vadd.f32 %v311, %v333
  %v352 = vadd.f32 %v312, %v337
  %v353 = vadd.f32 %v313, %v341
  %v354 = vadd.f32 %v314, %v345
  %v355 = vmax.f32 %v347, 0.0
  %v356 = vmax.f32 %v348, 0.0
  %v357 = vmax.f32 %v349, 0.0
  %v358 = vmax.f32 %v350, 0.0
  %v359 = vmax.f32 %v351, 0.0
  %v360 = vmax.f32 %v352, 0.0
  %v361 = vmax.f32 %v353, 0.0
  %v362 = vmax.f32 %v354, 0.0
  %v363 = vld [vmem:[%s4] sm:$0xff]
  %v364 = vld [vmem:[%s4 + $0x8] sm:$0xff]
  %v365 = vld [vmem:[%s4 + $0x10] sm:$0xff]
  %v366 = vld [vmem:[%s4 + $0x18] sm:$0xff]
  %v367 = vld [vmem:[%s4 + $0x20] sm:$0xff]
  %v368 = vld [vmem:[%s4 + $0x28] sm:$0xff]
  %v369 = vld [vmem:[%s4 + $0x30] sm:$0xff]
  %v370 = vld [vmem:[%s4 + $0x38] sm:$0xff]
  %v371 = vld [vmem:[%s3] sm:$0xff]
  %v372 = vld [vmem:[%s3 + $0x8] sm:$0xff]
  %v373 = vld [vmem:[%s3 + $0x10] sm:$0xff]
  %v374 = vld [vmem:[%s3 + $0x18] sm:$0xff]
  %v375 = vld [vmem:[%s3 + $0x20] sm:$0xff]
  %v376 = vld [vmem:[%s3 + $0x28] sm:$0xff]
  %v377 = vld [vmem:[%s3 + $0x30] sm:$0xff]
  %v378 = vld [vmem:[%s3 + $0x38] sm:$0xff]
  %380 = vset.pattern.permute.xlu0 0
  %381 = vperm.xlu0 %380, %v363
  %v382 = vpop.permute.xlu0 %381
  %385 = vset.pattern.permute.xlu0 0
  %386 = vperm.xlu0 %385, %v364
  %v387 = vpop.permute.xlu0 %386
  %390 = vset.pattern.permute.xlu0 0
  %391 = vperm.xlu0 %390, %v365
  %v392 = vpop.permute.xlu0 %391
  %395 = vset.pattern.permute.xlu0 0
  %396 = vperm.xlu0 %395, %v366
  %v397 = vpop.permute.xlu0 %396
  %400 = vset.pattern.permute.xlu0 0
  %401 = vperm.xlu0 %400, %v367
  %v402 = vpop.permute.xlu0 %401
  %405 = vset.pattern.permute.xlu0 0
  %406 = vperm.xlu0 %405, %v368
  %v407 = vpop.permute.xlu0 %406
  %410 = vset.pattern.permute.xlu0 0
  %411 = vperm.xlu0 %410, %v369
  %v412 = vpop.permute.xlu0 %411
  %415 = vset.pattern.permute.xlu0 0
  %416 = vperm.xlu0 %415, %v370
  %v417 = vpop.permute.xlu0 %416
  %vm419 = vcmask 523264
  %v421 = vsel %vm419, %v371, 0
  %v424 = vsel %vm419, %v372, 0
  %v427 = vsel %vm419, %v373, 0
  %v430 = vsel %vm419, %v374, 0
  %v433 = vsel %vm419, %v375, 0
  %v436 = vsel %vm419, %v376, 0
  %v439 = vsel %vm419, %v377, 0
  %v442 = vsel %vm419, %v378, 0
  %444 = vmatprep.subr.mxu0 0.0
  %445 = vmatpush1.msra.mxu0 0.0
  %446 = vmatprep.subr.mxu0 0.0
  %447 = vmatpush1.msra.mxu0 0.0
  %448 = vmatprep.subr.mxu0 0.0
  %449 = vmatpush1.msra.mxu0 0.0
  %450 = vmatprep.subr.mxu0 0.0
  %451 = vmatpush1.msra.mxu0 0.0
  %452 = vmatprep.subr.mxu0 0.0
  %453 = vmatpush1.msra.mxu0 0.0
  %454 = vmatprep.subr.mxu0 0.0
  %455 = vmatpush1.msra.mxu0 0.0
  %456 = vmatprep.subr.mxu0 0.0
  %457 = vmatpush1.msra.mxu0 0.0
  %458 = vmatprep.subr.mxu0 0.0
  %459 = vmatpush1.msra.mxu0 0.0
  %460 = vmatprep.subr.mxu0 0.0
  %461 = vmatpush1.msra.mxu0 %v362
  %462 = vmatprep.subr.mxu0 0.0
  %463 = vmatpush1.msra.mxu0 %v361
  %464 = vmatprep.subr.mxu0 0.0
  %465 = vmatpush1.msra.mxu0 %v360
  %466 = vmatprep.subr.mxu0 0.0
  %467 = vmatpush1.msra.mxu0 %v359
  %468 = vmatprep.subr.mxu0 0.0
  %469 = vmatpush1.msra.mxu0 %v358
  %470 = vmatprep.subr.mxu0 0.0
  %471 = vmatpush1.msra.mxu0 %v357
  %472 = vmatprep.subr.mxu0 0.0
  %473 = vmatpush1.msra.mxu0 %v356
  %474 = vmatprep.subr.mxu0 0.0
  %475 = vmatpush1.msra.mxu0 %v355
  %476 = vmatprep.subr.mxu0 0.0
  %477 = vmatpush2.msra.mxu0 0.0
  %478 = vmatprep.subr.mxu0 0.0
  %479 = vmatpush2.msra.mxu0 0.0
  %480 = vmatprep.subr.mxu0 0.0
  %481 = vmatpush2.msra.mxu0 0.0
  %482 = vmatprep.subr.mxu0 0.0
  %483 = vmatpush2.msra.mxu0 0.0
  %484 = vmatprep.subr.mxu0 0.0
  %485 = vmatpush2.msra.mxu0 0.0
  %486 = vmatprep.subr.mxu0 0.0
  %487 = vmatpush2.msra.mxu0 0.0
  %488 = vmatprep.subr.mxu0 0.0
  %489 = vmatpush2.msra.mxu0 0.0
  %490 = vmatprep.subr.mxu0 0.0
  %491 = vmatpush2.msra.mxu0 0.0
  %492 = vmatprep.subr.mxu0 0.0
  %493 = vmatpush2.msra.mxu0 0.0
  %494 = vmatprep.subr.mxu0 0.0
  %495 = vmatpush2.msra.mxu0 0.0
  %496 = vmatprep.subr.mxu0 0.0
  %497 = vmatpush2.msra.mxu0 0.0
  %498 = vmatprep.subr.mxu0 0.0
  %499 = vmatpush2.msra.mxu0 0.0
  %500 = vmatprep.subr.mxu0 0.0
  %501 = vmatpush2.msra.mxu0 0.0
  %502 = vmatprep.subr.mxu0 0.0
  %503 = vmatpush2.msra.mxu0 0.0
  %504 = vmatprep.subr.mxu0 0.0
  %505 = vmatpush2.msra.mxu0 0.0
  %506 = vmatprep.subr.mxu0 0.0
  %507 = vmatpush2.msra.mxu0 0.0
  %508 = vmatprep.mubr.f32.mxu0 0.0
  %509 = vmatmul.mubr.f32.gmra.mxu0 %v421
  %v510 = vpop.f32.mrf.mxu0
  %v511 = vadd.f32 %v382, %v510
  %v512 = vpop.f32.mrf.mxu0
  %513 = vmatprep.mubr.f32.mxu0 0.0
  %514 = vmatmul.mubr.f32.gmra.mxu0 %v424
  %v515 = vpop.f32.mrf.mxu0
  %v516 = vadd.f32 %v387, %v515
  %v517 = vpop.f32.mrf.mxu0
  %518 = vmatprep.mubr.f32.mxu0 0.0
  %519 = vmatmul.mubr.f32.gmra.mxu0 %v427
  %v520 = vpop.f32.mrf.mxu0
  %v521 = vadd.f32 %v392, %v520
  %v522 = vpop.f32.mrf.mxu0
  %523 = vmatprep.mubr.f32.mxu0 0.0
  %524 = vmatmul.mubr.f32.gmra.mxu0 %v430
  %v525 = vpop.f32.mrf.mxu0
  %v526 = vadd.f32 %v397, %v525
  %v527 = vpop.f32.mrf.mxu0
  %528 = vmatprep.mubr.f32.mxu0 0.0
  %529 = vmatmul.mubr.f32.gmra.mxu0 %v433
  %v530 = vpop.f32.mrf.mxu0
  %v531 = vadd.f32 %v402, %v530
  %v532 = vpop.f32.mrf.mxu0
  %533 = vmatprep.mubr.f32.mxu0 0.0
  %534 = vmatmul.mubr.f32.gmra.mxu0 %v436
  %v535 = vpop.f32.mrf.mxu0
  %v536 = vadd.f32 %v407, %v535
  %v537 = vpop.f32.mrf.mxu0
  %538 = vmatprep.mubr.f32.mxu0 0.0
  %539 = vmatmul.mubr.f32.gmra.mxu0 %v439
  %v540 = vpop.f32.mrf.mxu0
  %v541 = vadd.f32 %v412, %v540
  %v542 = vpop.f32.mrf.mxu0
  %543 = vmatprep.mubr.f32.mxu0 0.0
  %544 = vmatmul.mubr.f32.gmra.mxu0 %v442
  %v545 = vpop.f32.mrf.mxu0
  %v546 = vadd.f32 %v417, %v545
  %v547 = vpop.f32.mrf.mxu0
  %548 = vdwg.mxu0
  %v549 = vadd.f32 %v511, %v516
  %v550 = vadd.f32 %v549, %v521
  %v551 = vadd.f32 %v550, %v526
  %v552 = vadd.f32 %v551, %v531
  %v553 = vadd.f32 %v552, %v536
  %v554 = vadd.f32 %v553, %v541
  %v555 = vadd.f32 %v554, %v546
  %v556 = vrot.slane %v555, 4
  %v557 = vadd.f32 %v555, %v556
  %v558 = vrot.slane %v557, 2
  %v559 = vadd.f32 %v557, %v558
  %v560 = vrot.slane %v559, 1
  %v561 = vadd.f32 %v559, %v560
  %v562 = vmul.f32 %v561, %v231
  %v563 = vmul.f32 %v511, %v511
  %v564 = vmul.f32 %v516, %v516
  %v565 = vmul.f32 %v521, %v521
  %v566 = vmul.f32 %v526, %v526
  %v567 = vmul.f32 %v531, %v531
  %v568 = vmul.f32 %v536, %v536
  %v569 = vmul.f32 %v541, %v541
  %v570 = vmul.f32 %v546, %v546
  %v571 = vadd.f32 %v563, %v564
  %v572 = vadd.f32 %v571, %v565
  %v573 = vadd.f32 %v572, %v566
  %v574 = vadd.f32 %v573, %v567
  %v575 = vadd.f32 %v574, %v568
  %v576 = vadd.f32 %v575, %v569
  %v577 = vadd.f32 %v576, %v570
  %v578 = vrot.slane %v577, 4
  %v579 = vadd.f32 %v577, %v578
  %v580 = vrot.slane %v579, 2
  %v581 = vadd.f32 %v579, %v580
  %v582 = vrot.slane %v581, 1
  %v583 = vadd.f32 %v581, %v582
  %v584 = vmul.f32 %v583, %v231
  %v585 = vmul.f32 %v562, %v562
  %v586 = vsub.f32 %v584, %v585
  %v587 = vadd.f32 %v586, 1e-05
  %v588 = vrsqrt.pop %v587
  %v589 = vsub.f32 %v511, %v562
  %v590 = vsub.f32 %v516, %v562
  %v591 = vsub.f32 %v521, %v562
  %v592 = vsub.f32 %v526, %v562
  %v593 = vsub.f32 %v531, %v562
  %v594 = vsub.f32 %v536, %v562
  %v595 = vsub.f32 %v541, %v562
  %v596 = vsub.f32 %v546, %v562
  %v597 = vmul.f32 %v589, %v588
  %v598 = vmul.f32 %v590, %v588
  %v599 = vmul.f32 %v591, %v588
  %v600 = vmul.f32 %v592, %v588
  %v601 = vmul.f32 %v593, %v588
  %v602 = vmul.f32 %v594, %v588
  %v603 = vmul.f32 %v595, %v588
  %v604 = vmul.f32 %v596, %v588
  %605 = vset.pattern.permute.xlu0 1
  %606 = vperm.xlu0 %605, %v363
  %v607 = vpop.permute.xlu0 %606
  %609 = vset.pattern.permute.xlu0 1
  %610 = vperm.xlu0 %609, %v364
  %v611 = vpop.permute.xlu0 %610
  %613 = vset.pattern.permute.xlu0 1
  %614 = vperm.xlu0 %613, %v365
  %v615 = vpop.permute.xlu0 %614
  %617 = vset.pattern.permute.xlu0 1
  %618 = vperm.xlu0 %617, %v366
  %v619 = vpop.permute.xlu0 %618
  %621 = vset.pattern.permute.xlu0 1
  %622 = vperm.xlu0 %621, %v367
  %v623 = vpop.permute.xlu0 %622
  %625 = vset.pattern.permute.xlu0 1
  %626 = vperm.xlu0 %625, %v368
  %v627 = vpop.permute.xlu0 %626
  %629 = vset.pattern.permute.xlu0 1
  %630 = vperm.xlu0 %629, %v369
  %v631 = vpop.permute.xlu0 %630
  %633 = vset.pattern.permute.xlu0 1
  %634 = vperm.xlu0 %633, %v370
  %v635 = vpop.permute.xlu0 %634
  %v637 = vmul.f32 %v597, %v607
  %v638 = vmul.f32 %v598, %v611
  %v639 = vmul.f32 %v599, %v615
  %v640 = vmul.f32 %v600, %v619
  %v641 = vmul.f32 %v601, %v623
  %v642 = vmul.f32 %v602, %v627
  %v643 = vmul.f32 %v603, %v631
  %v644 = vmul.f32 %v604, %v635
  %645 = vset.pattern.permute.xlu0 2
  %646 = vperm.xlu0 %645, %v363
  %v647 = vpop.permute.xlu0 %646
  %649 = vset.pattern.permute.xlu0 2
  %650 = vperm.xlu0 %649, %v364
  %v651 = vpop.permute.xlu0 %650
  %653 = vset.pattern.permute.xlu0 2
  %654 = vperm.xlu0 %653, %v365
  %v655 = vpop.permute.xlu0 %654
  %657 = vset.pattern.permute.xlu0 2
  %658 = vperm.xlu0 %657, %v366
  %v659 = vpop.permute.xlu0 %658
  %661 = vset.pattern.permute.xlu0 2
  %662 = vperm.xlu0 %661, %v367
  %v663 = vpop.permute.xlu0 %662
  %665 = vset.pattern.permute.xlu0 2
  %666 = vperm.xlu0 %665, %v368
  %v667 = vpop.permute.xlu0 %666
  %669 = vset.pattern.permute.xlu0 2
  %670 = vperm.xlu0 %669, %v369
  %v671 = vpop.permute.xlu0 %670
  %673 = vset.pattern.permute.xlu0 2
  %674 = vperm.xlu0 %673, %v370
  %v675 = vpop.permute.xlu0 %674
  %v677 = vadd.f32 %v637, %v647
  %v678 = vadd.f32 %v638, %v651
  %v679 = vadd.f32 %v639, %v655
  %v680 = vadd.f32 %v640, %v659
  %v681 = vadd.f32 %v641, %v663
  %v682 = vadd.f32 %v642, %v667
  %v683 = vadd.f32 %v643, %v671
  %v684 = vadd.f32 %v644, %v675
  %v685 = vmax.f32 %v677, 0.0
  %v686 = vmax.f32 %v678, 0.0
  %v687 = vmax.f32 %v679, 0.0
  %v688 = vmax.f32 %v680, 0.0
  %v689 = vmax.f32 %v681, 0.0
  %v690 = vmax.f32 %v682, 0.0
  %v691 = vmax.f32 %v683, 0.0
  %v692 = vmax.f32 %v684, 0.0
  %v693 = vld [vmem:[%s5] sm:$0x1]
  %v694 = vld [vmem:[#allocation2] sm:$0x1]
  %696 = vset.pattern.permute.xlu0 0
  %697 = vperm.xlu0 %696, %v694
  %v698 = vpop.permute.xlu0 %697
  %v700 = vlaneseq
  %v701 = vshrl.u32 %v700, 7
  %v702 = vsub.s32 0, %v701
  %v703 = vrot.slane %v698, %v702
  %v705 = vsel %vm419, %v693, 0
  %707 = vmatprep.subr.mxu0 0.0
  %708 = vmatpush1.msra.mxu0 0.0
  %709 = vmatprep.subr.mxu0 0.0
  %710 = vmatpush1.msra.mxu0 0.0
  %711 = vmatprep.subr.mxu0 0.0
  %712 = vmatpush1.msra.mxu0 0.0
  %713 = vmatprep.subr.mxu0 0.0
  %714 = vmatpush1.msra.mxu0 0.0
  %715 = vmatprep.subr.mxu0 0.0
  %716 = vmatpush1.msra.mxu0 0.0
  %717 = vmatprep.subr.mxu0 0.0
  %718 = vmatpush1.msra.mxu0 0.0
  %719 = vmatprep.subr.mxu0 0.0
  %720 = vmatpush1.msra.mxu0 0.0
  %721 = vmatprep.subr.mxu0 0.0
  %722 = vmatpush1.msra.mxu0 0.0
  %723 = vmatprep.subr.mxu0 0.0
  %724 = vmatpush1.msra.mxu0 %v692
  %725 = vmatprep.subr.mxu0 0.0
  %726 = vmatpush1.msra.mxu0 %v691
  %727 = vmatprep.subr.mxu0 0.0
  %728 = vmatpush1.msra.mxu0 %v690
  %729 = vmatprep.subr.mxu0 0.0
  %730 = vmatpush1.msra.mxu0 %v689
  %731 = vmatprep.subr.mxu0 0.0
  %732 = vmatpush1.msra.mxu0 %v688
  %733 = vmatprep.subr.mxu0 0.0
  %734 = vmatpush1.msra.mxu0 %v687
  %735 = vmatprep.subr.mxu0 0.0
  %736 = vmatpush1.msra.mxu0 %v686
  %737 = vmatprep.subr.mxu0 0.0
  %738 = vmatpush1.msra.mxu0 %v685
  %739 = vmatprep.subr.mxu0 0.0
  %740 = vmatpush2.msra.mxu0 0.0
  %741 = vmatprep.subr.mxu0 0.0
  %742 = vmatpush2.msra.mxu0 0.0
  %743 = vmatprep.subr.mxu0 0.0
  %744 = vmatpush2.msra.mxu0 0.0
  %745 = vmatprep.subr.mxu0 0.0
  %746 = vmatpush2.msra.mxu0 0.0
  %747 = vmatprep.subr.mxu0 0.0
  %748 = vmatpush2.msra.mxu0 0.0
  %749 = vmatprep.subr.mxu0 0.0
  %750 = vmatpush2.msra.mxu0 0.0
  %751 = vmatprep.subr.mxu0 0.0
  %752 = vmatpush2.msra.mxu0 0.0
  %753 = vmatprep.subr.mxu0 0.0
  %754 = vmatpush2.msra.mxu0 0.0
  %755 = vmatprep.subr.mxu0 0.0
  %756 = vmatpush2.msra.mxu0 0.0
  %757 = vmatprep.subr.mxu0 0.0
  %758 = vmatpush2.msra.mxu0 0.0
  %759 = vmatprep.subr.mxu0 0.0
  %760 = vmatpush2.msra.mxu0 0.0
  %761 = vmatprep.subr.mxu0 0.0
  %762 = vmatpush2.msra.mxu0 0.0
  %763 = vmatprep.subr.mxu0 0.0
  %764 = vmatpush2.msra.mxu0 0.0
  %765 = vmatprep.subr.mxu0 0.0
  %766 = vmatpush2.msra.mxu0 0.0
  %767 = vmatprep.subr.mxu0 0.0
  %768 = vmatpush2.msra.mxu0 0.0
  %769 = vmatprep.subr.mxu0 0.0
  %770 = vmatpush2.msra.mxu0 0.0
  %771 = vmatprep.mubr.f32.mxu0 0.0
  %772 = vmatmul.mubr.f32.gmra.mxu0 %v705
  %v773 = vpop.f32.mrf.mxu0
  %v774 = vadd.f32 %v703, %v773
  %v775 = vpop.f32.mrf.mxu0
  %776 = vdwg.mxu0
  %777 = vst [vmem:[%s7] sm:$0x1] %v774
  // Predicated region
  $region30: #{mlp_forward.1} parent=0 // pred_check
    _
  $region31: #{mlp_forward.1} parent=0 // pred_check_branch
    %779 = sbr.rel (0) target = $region33
  $region32: #{mlp_forward.1} parent=0 // pred_region
    _
  $region33: #{mlp_forward.1} parent=0 // pred_fallthru
    _
  // Predicated region
  $region34: #{mlp_forward.1} parent=0 // pred_check
    _
  $region35: #{mlp_forward.1} parent=0 // pred_check_branch
    %781 = sbr.rel (0) target = $region37
  $region36: #{mlp_forward.1} parent=0 // pred_region
    _
  $region37: #{mlp_forward.1} parent=0 // pred_fallthru
    _

</llo_original>
